<compile_context>
chip_gen: v7x
topology: tpu7x:2x2x1
jax: 0.10.0
libtpu: 0.0.40
codegen_flags: <defaults>
</compile_context>

<pallas_src>
import functools

import jax
import jax.numpy as jnp
from jax.experimental import pallas as pl
from jax.experimental.pallas import tpu as pltpu


def _round_up(a: int, b: int) -> int:
    return (a + b - 1) // b * b


def _highway_kernel(x_ref, w_ref, b_ref, o_ref):
    # x_ref: (tm, Dp) native dtype; w_ref: (Dp, 2*Dp) = [Wh^T | Wt^T];
    # b_ref: (1, 2*Dp) f32 = [bh | bt]; o_ref: (tm, Dp).
    dp = x_ref.shape[-1]
    x = x_ref[...]                                       # native dtype on the MXU path
    acc = jnp.dot(x, w_ref[...], preferred_element_type=jnp.float32)
    acc = acc + b_ref[...]                               # f32 bias add
    h = acc[:, :dp]                                      # Wh branch (tile-aligned slice)
    t = acc[:, dp:]                                      # Wt branch
    gate = jax.nn.sigmoid(t)                             # EUP
    xf = x.astype(jnp.float32)
    # gate * relu(h) + (1 - gate) * x  ==  gate * (relu(h) - x) + x
    y = gate * (jnp.maximum(h, 0.0) - xf) + xf
    o_ref[...] = y.astype(o_ref.dtype)


@functools.partial(jax.jit, static_argnames=("tm",))
def highway_forward(x, wh, bh, wt, bt, *, tm=256):
    """x: (..., D); wh, wt: (D, D) PyTorch-style (out, in); bh, bt: (D,)."""
    orig_shape = x.shape
    D = orig_shape[-1]
    x2 = x.reshape(-1, D)
    N = x2.shape[0]

    in_dtype = x.dtype
    in_bytes = jnp.dtype(in_dtype).itemsize

    # Lane-dense feature dim (multiple of 128).
    Dp = _round_up(D, 128)
    pad_c = Dp - D

    # Row tile: multiple of 8, no larger than the (padded) row count, and small
    # enough that resident weight + double-buffered x/out tiles + f32 epilogue
    # intermediates stay well inside VMEM (v7x has only 64 MiB per TC).
    weight_bytes = 2 * Dp * (2 * Dp) * in_bytes + 2 * (2 * Dp) * 4
    per_row_bytes = 4 * Dp * in_bytes + 3 * (2 * Dp) * 4   # 2x(x+out dbl-buf) + f32 tmps
    budget = (48 << 20) - weight_bytes
    tm_cap = max(8, min(tm, budget // max(per_row_bytes, 1)))
    tm_eff = _round_up(min(tm_cap, _round_up(N, 8)), 8)
    Np = _round_up(N, tm_eff)
    pad_r = Np - N

    x_p = x2
    if pad_r or pad_c:
        x_p = jnp.pad(x2, ((0, pad_r), (0, pad_c)))

    # Fused weight [Wh^T | Wt^T] (zero padded) in the input dtype; bias in f32.
    wh_p = jnp.pad(wh.T.astype(in_dtype), ((0, pad_c), (0, pad_c)))
    wt_p = jnp.pad(wt.T.astype(in_dtype), ((0, pad_c), (0, pad_c)))
    w_fused = jnp.concatenate([wh_p, wt_p], axis=1)          # (Dp, 2*Dp)
    b_fused = jnp.concatenate(
        [jnp.pad(bh.astype(jnp.float32), (0, pad_c)),
         jnp.pad(bt.astype(jnp.float32), (0, pad_c))])[None, :]  # (1, 2*Dp)

    grid = (Np // tm_eff,)

    # Explicit VMEM budget: double-buffered x/out tiles + resident fused
    # weight/bias + f32 intermediates + headroom.
    est = (2 * tm_eff * Dp * in_bytes            # x tile (double-buffered)
           + 2 * tm_eff * Dp * in_bytes          # out tile (double-buffered)
           + weight_bytes                        # fused weight + bias (constant index)
           + 3 * tm_eff * (2 * Dp) * 4)          # f32 epilogue intermediates
    vmem_limit = int(min(est + (8 << 20), 64 << 20))

    out = pl.pallas_call(
        _highway_kernel,
        out_shape=jax.ShapeDtypeStruct((Np, Dp), in_dtype),
        grid_spec=pltpu.PrefetchScalarGridSpec(
            num_scalar_prefetch=0,
            grid=grid,
            in_specs=[
                pl.BlockSpec((tm_eff, Dp), lambda i: (i, 0)),   # x row tile
                pl.BlockSpec((Dp, 2 * Dp), lambda i: (0, 0)),   # [Wh^T | Wt^T] resident
                pl.BlockSpec((1, 2 * Dp), lambda i: (0, 0)),    # [bh | bt] resident
            ],
            out_specs=pl.BlockSpec((tm_eff, Dp), lambda i: (i, 0)),
        ),
        compiler_params=pltpu.CompilerParams(
            dimension_semantics=("parallel",),
            vmem_limit_bytes=vmem_limit,
        ),
    )(x_p, w_fused, b_fused)

    return out[:N, :D].reshape(orig_shape)


def _reference(x, wh, bh, wt, bt):
    h = x @ wh.T + bh
    t = jax.nn.sigmoid(x @ wt.T + bt)
    return t * jnp.maximum(h, 0.0) + (1.0 - t) * x


if __name__ == "__main__":
    key = jax.random.PRNGKey(0)
    batch, seq, word_dim = 2, 8, 32

    kx, kwh, kbh, kwt, kbt = jax.random.split(key, 5)
    x = jax.random.normal(kx, (batch, seq, word_dim), dtype=jnp.float32)
    # PyTorch Linear shapes: W (out, in), b (out,)
    wh = jax.random.normal(kwh, (word_dim, word_dim), dtype=jnp.float32) * 0.1
    bh = jax.random.normal(kbh, (word_dim,), dtype=jnp.float32) * 0.1
    wt = jax.random.normal(kwt, (word_dim, word_dim), dtype=jnp.float32) * 0.1
    bt = jax.random.normal(kbt, (word_dim,), dtype=jnp.float32) * 0.1

    y = highway_forward(x, wh, bh, wt, bt)
    jax.block_until_ready(y)

    y_ref = _reference(x, wh, bh, wt, bt)
    assert y.shape == x.shape
    assert jnp.allclose(y, y_ref, atol=1e-5, rtol=1e-5), "mismatch vs reference"

    print("KERNEL_OK")
</pallas_src>

<mosaic_0001>
module attributes {stable_mosaic.version = 11 : i64} {
  func.func @_highway_kernel(%arg0: i32, %arg1: memref<16x128xf32, #tpu.memory_space<vmem>>, %arg2: memref<128x256xf32, #tpu.memory_space<vmem>>, %arg3: memref<1x256xf32, #tpu.memory_space<vmem>>, %arg4: memref<16x128xf32, #tpu.memory_space<vmem>>) attributes {dimension_semantics = [#tpu.dimension_semantics<parallel>], iteration_bounds = array<i64: 1>, scalar_prefetch = 0 : i64, scratch_operands = 0 : i64, tpu.core_type = #tpu.core_type<tc>, window_params = [{transform_indices = @transform_0, window_bounds = array<i64: 16, 128>}, {pipeline_mode = #tpu.pipeline_mode<synchronous>, transform_indices = @transform_1, window_bounds = array<i64: 128, 256>}, {pipeline_mode = #tpu.pipeline_mode<synchronous>, transform_indices = @transform_2, window_bounds = array<i64: 1, 256>}, {transform_indices = @transform_3, window_bounds = array<i64: 16, 128>}]} {
    %c0 = arith.constant 0 : index
    %c0_0 = arith.constant 0 : index
    %0 = vector.load %arg1[%c0, %c0_0] : memref<16x128xf32, #tpu.memory_space<vmem>>, vector<16x128xf32>
    %c0_1 = arith.constant 0 : index
    %c0_2 = arith.constant 0 : index
    %1 = vector.load %arg2[%c0_1, %c0_2] : memref<128x256xf32, #tpu.memory_space<vmem>>, vector<128x256xf32>
    %cst = arith.constant dense<0.000000e+00> : vector<16x256xf32>
    %2 = tpu.matmul %0, %1, %cst {dimension_numbers = #tpu.dot_dimension_numbers<[1], [0], [0], [1], [0, 0, 1, 1], [], []>} : vector<16x128xf32>, vector<128x256xf32>, vector<16x256xf32> -> vector<16x256xf32>
    %c0_3 = arith.constant 0 : index
    %c0_4 = arith.constant 0 : index
    %3 = vector.load %arg3[%c0_3, %c0_4] : memref<1x256xf32, #tpu.memory_space<vmem>>, vector<1x256xf32>
    %4 = vector.broadcast %3 : vector<1x256xf32> to vector<16x256xf32>
    %5 = arith.addf %2, %4 : vector<16x256xf32>
    %6 = vector.extract_strided_slice %5 {offsets = [0, 0], sizes = [16, 128], strides = [1, 1]} : vector<16x256xf32> to vector<16x128xf32>
    %7 = vector.extract_strided_slice %5 {offsets = [0, 128], sizes = [16, 128], strides = [1, 1]} : vector<16x256xf32> to vector<16x128xf32>
    %8 = arith.negf %7 : vector<16x128xf32>
    %9 = math.exp %8 : vector<16x128xf32>
    %cst_5 = arith.constant 1.000000e+00 : f32
    %10 = vector.broadcast %cst_5 : f32 to vector<16x128xf32>
    %11 = arith.addf %10, %9 : vector<16x128xf32>
    %12 = arith.divf %10, %11 : vector<16x128xf32>
    %cst_6 = arith.constant 0.000000e+00 : f32
    %13 = vector.broadcast %cst_6 : f32 to vector<16x128xf32>
    %14 = arith.maximumf %6, %13 : vector<16x128xf32>
    %15 = arith.subf %14, %0 : vector<16x128xf32>
    %16 = arith.mulf %12, %15 : vector<16x128xf32>
    %17 = arith.addf %16, %0 : vector<16x128xf32>
    %c0_7 = arith.constant 0 : index
    %c0_8 = arith.constant 0 : index
    %18 = vector.load %arg4[%c0_7, %c0_8] : memref<16x128xf32, #tpu.memory_space<vmem>>, vector<16x128xf32>
    tpu.vector_store %arg4[%c0_7, %c0_8], %17 {strides = array<i32>} : memref<16x128xf32, #tpu.memory_space<vmem>>, vector<16x128xf32>,
    return
  }
  func.func @transform_0(%arg0: i32) -> (i32, i32) {
    %c0_i32 = arith.constant 0 : i32
    %c0_i32_0 = arith.constant 0 : i32
    return %arg0, %c0_i32 : i32, i32
  }
  func.func @transform_1(%arg0: i32) -> (i32, i32) {
    %c0_i32 = arith.constant 0 : i32
    %c0_i32_0 = arith.constant 0 : i32
    %c0_i32_1 = arith.constant 0 : i32
    return %c0_i32, %c0_i32_0 : i32, i32
  }
  func.func @transform_2(%arg0: i32) -> (i32, i32) {
    %c0_i32 = arith.constant 0 : i32
    %c0_i32_0 = arith.constant 0 : i32
    %c0_i32_1 = arith.constant 0 : i32
    return %c0_i32, %c0_i32_0 : i32, i32
  }
  func.func @transform_3(%arg0: i32) -> (i32, i32) {
    %c0_i32 = arith.constant 0 : i32
    %c0_i32_0 = arith.constant 0 : i32
    return %arg0, %c0_i32 : i32, i32
  }
}

</mosaic_0001>

<llo_original>
// kernel: highway_forward.1
$region0: #{highway_forward.1}
  #allocation0 [shape = 'u32[]', space=smem, size = 0x4, offset = 0x4, fixed_abs, tag = 'smem constant byte address 0x4 - core index']
  #allocation1 [shape = 'u32[144,128]{1,0:T(1,128)}', space=vmem, size = 0x12000, scoped, tag = 'internal scratch']
  %s0 = inlined_call_operand.vmem [shape: f32[16,128], index: 0, kind: input, shape index: {}]
  %s1 = inlined_call_operand.vmem [shape: f32[128,256], index: 1, kind: input, shape index: {}]
  %s2 = inlined_call_operand.vmem [shape: f32[1,256], index: 2, kind: input, shape index: {}]
  %s3 = inlined_call_operand.vmem [shape: f32[16,128], index: 3, kind: output, shape index: {}]
  %s4 = sld [smem:[#allocation0]]
  $region22: #{highway_forward.1} parent=0
    _
  %s6 = ssub.s32 1, %s4
  %s7 = scalar_select 0, %s6, %s4
  // Predicated region
  $region2: #{highway_forward.1} parent=0 // pred_check
    _
  $region3: #{highway_forward.1} parent=0 // pred_check_branch
    %9 = sbr.rel (0) target = $region5
  $region4: #{highway_forward.1} parent=0 // pred_region
    _
  $region5: #{highway_forward.1} parent=0 // pred_fallthru
    _
  // Predicated region
  $region6: #{highway_forward.1} parent=0 // pred_check
    _
  $region7: #{highway_forward.1} parent=0 // pred_check_branch
    %11 = sbr.rel (0) target = $region9
  $region8: #{highway_forward.1} parent=0 // pred_region
    _
  $region9: #{highway_forward.1} parent=0 // pred_fallthru
    _
  // Predicated region
  $region10: #{highway_forward.1} parent=0 // pred_check
    _
  $region11: #{highway_forward.1} parent=0 // pred_check_branch
    %13 = sbr.rel (0) target = $region13
  $region12: #{highway_forward.1} parent=0 // pred_region
    _
  $region13: #{highway_forward.1} parent=0 // pred_fallthru
    _
  %v14 = vld [vmem:[%s0] sm:$0xff]
  %v15 = vld [vmem:[%s0 + $0x8] sm:$0xff]
  %v16 = vld [vmem:[%s1] sm:$0xff]
  %v17 = vld [vmem:[%s1 + $0x8] sm:$0xff]
  %v18 = vld [vmem:[%s1 + $0x10] sm:$0xff]
  %v19 = vld [vmem:[%s1 + $0x18] sm:$0xff]
  %v20 = vld [vmem:[%s1 + $0x20] sm:$0xff]
  %v21 = vld [vmem:[%s1 + $0x28] sm:$0xff]
  %v22 = vld [vmem:[%s1 + $0x30] sm:$0xff]
  %v23 = vld [vmem:[%s1 + $0x38] sm:$0xff]
  %v24 = vld [vmem:[%s1 + $0x40] sm:$0xff]
  %v25 = vld [vmem:[%s1 + $0x48] sm:$0xff]
  %v26 = vld [vmem:[%s1 + $0x50] sm:$0xff]
  %v27 = vld [vmem:[%s1 + $0x58] sm:$0xff]
  %v28 = vld [vmem:[%s1 + $0x60] sm:$0xff]
  %v29 = vld [vmem:[%s1 + $0x68] sm:$0xff]
  %v30 = vld [vmem:[%s1 + $0x70] sm:$0xff]
  %v31 = vld [vmem:[%s1 + $0x78] sm:$0xff]
  %v32 = vld [vmem:[%s1 + $0x80] sm:$0xff]
  %v33 = vld [vmem:[%s1 + $0x88] sm:$0xff]
  %v34 = vld [vmem:[%s1 + $0x90] sm:$0xff]
  %v35 = vld [vmem:[%s1 + $0x98] sm:$0xff]
  %v36 = vld [vmem:[%s1 + $0xa0] sm:$0xff]
  %v37 = vld [vmem:[%s1 + $0xa8] sm:$0xff]
  %v38 = vld [vmem:[%s1 + $0xb0] sm:$0xff]
  %v39 = vld [vmem:[%s1 + $0xb8] sm:$0xff]
  %v40 = vld [vmem:[%s1 + $0xc0] sm:$0xff]
  %v41 = vld [vmem:[%s1 + $0xc8] sm:$0xff]
  %v42 = vld [vmem:[%s1 + $0xd0] sm:$0xff]
  %v43 = vld [vmem:[%s1 + $0xd8] sm:$0xff]
  %v44 = vld [vmem:[%s1 + $0xe0] sm:$0xff]
  %v45 = vld [vmem:[%s1 + $0xe8] sm:$0xff]
  %v46 = vld [vmem:[%s1 + $0xf0] sm:$0xff]
  %v47 = vld [vmem:[%s1 + $0xf8] sm:$0xff]
  %v48 = vld [vmem:[%s2] sm:$0x3]
  %v50 = vlaneseq
  %v51 = vshrl.u32 %v50, 7
  %v52 = vsub.s32 0, %v51
  %v53 = vrot.slane %v48, %v52
  %v54 = vlaneseq
  %v55 = vshrl.u32 %v54, 7
  %v56 = vsub.s32 1, %v55
  %v57 = vrot.slane %v48, %v56
  %60 = vmatprep.subr.mxu0 %v17
  %61 = vmatpush1.msra.mxu0 %v16
  %62 = vmatprep.subr.mxu0 %v19
  %63 = vmatpush1.msra.mxu0 %v18
  %64 = vmatprep.subr.mxu0 %v21
  %65 = vmatpush1.msra.mxu0 %v20
  %66 = vmatprep.subr.mxu0 %v23
  %67 = vmatpush1.msra.mxu0 %v22
  %68 = vmatprep.subr.mxu0 %v25
  %69 = vmatpush1.msra.mxu0 %v24
  %70 = vmatprep.subr.mxu0 %v27
  %71 = vmatpush1.msra.mxu0 %v26
  %72 = vmatprep.subr.mxu0 %v29
  %73 = vmatpush1.msra.mxu0 %v28
  %74 = vmatprep.subr.mxu0 %v31
  %75 = vmatpush1.msra.mxu0 %v30
  %76 = vmatprep.subr.mxu0 %v33
  %77 = vmatpush1.msra.mxu0 %v32
  %78 = vmatprep.subr.mxu0 %v35
  %79 = vmatpush1.msra.mxu0 %v34
  %80 = vmatprep.subr.mxu0 %v37
  %81 = vmatpush1.msra.mxu0 %v36
  %82 = vmatprep.subr.mxu0 %v39
  %83 = vmatpush1.msra.mxu0 %v38
  %84 = vmatprep.subr.mxu0 %v41
  %85 = vmatpush1.msra.mxu0 %v40
  %86 = vmatprep.subr.mxu0 %v43
  %87 = vmatpush1.msra.mxu0 %v42
  %88 = vmatprep.subr.mxu0 %v45
  %89 = vmatpush1.msra.mxu0 %v44
  %90 = vmatprep.subr.mxu0 %v47
  %91 = vmatpush1.msra.mxu0 %v46
  %92 = vmatprep.subr.mxu0 0.0
  %93 = vmatpush1.msra.mxu0 0.0
  %94 = vmatprep.subr.mxu0 0.0
  %95 = vmatpush1.msra.mxu0 0.0
  %96 = vmatprep.subr.mxu0 0.0
  %97 = vmatpush1.msra.mxu0 0.0
  %98 = vmatprep.subr.mxu0 0.0
  %99 = vmatpush1.msra.mxu0 0.0
  %100 = vmatprep.subr.mxu0 0.0
  %101 = vmatpush1.msra.mxu0 0.0
  %102 = vmatprep.subr.mxu0 0.0
  %103 = vmatpush1.msra.mxu0 0.0
  %104 = vmatprep.subr.mxu0 0.0
  %105 = vmatpush1.msra.mxu0 0.0
  %106 = vmatprep.subr.mxu0 0.0
  %107 = vmatpush1.msra.mxu0 0.0
  %108 = vmatprep.subr.mxu0 0.0
  %109 = vmatpush1.msra.mxu0 0.0
  %110 = vmatprep.subr.mxu0 0.0
  %111 = vmatpush1.msra.mxu0 0.0
  %112 = vmatprep.subr.mxu0 0.0
  %113 = vmatpush1.msra.mxu0 0.0
  %114 = vmatprep.subr.mxu0 0.0
  %115 = vmatpush1.msra.mxu0 0.0
  %116 = vmatprep.subr.mxu0 0.0
  %117 = vmatpush1.msra.mxu0 0.0
  %118 = vmatprep.subr.mxu0 0.0
  %119 = vmatpush1.msra.mxu0 0.0
  %120 = vmatprep.subr.mxu0 0.0
  %121 = vmatpush1.msra.mxu0 0.0
  %122 = vmatprep.subr.mxu0 0.0
  %123 = vmatpush1.msra.mxu0 0.0
  %124 = vmatprep.mubr.f32.mxu0 0.0
  %125 = vmatmul.mubr.f32.gmra.mrb[0].mxu0 %v14
  %v126 = vpop.f32.mrb[0].mxu0
  %v127 = vadd.f32 %v53, %v126
  %v128 = vpop.f32.mrb[0].mxu0
  %v129 = vadd.f32 %v57, %v128
  %130 = vmatprep.mubr.f32.mxu0 0.0
  %131 = vmatmul.mubr.f32.gmra.mrb[0].mxu0 %v15
  %v132 = vpop.f32.mrb[0].mxu0
  %v133 = vadd.f32 %v53, %v132
  %v134 = vpop.f32.mrb[0].mxu0
  %v135 = vadd.f32 %v57, %v134
  %136 = vdwg.mxu0
  %v137 = vxor.u32 %v129, 2147483648
  %v138 = vxor.u32 %v135, 2147483648
  %v139 = vmul.f32 %v137, 1.442695
  %v140 = vpow.pop %v139
  %v141 = vmul.f32 %v138, 1.442695
  %v142 = vpow.pop %v141
  %v143 = vadd.f32 %v140, 1.0
  %v144 = vadd.f32 %v142, 1.0
  %v145 = vrcp.pop %v143
  %v146 = vmul.f32 1.0, %v145
  %v147 = vrcp.pop %v144
  %v148 = vmul.f32 1.0, %v147
  %v149 = vmax.f32 %v127, 0.0
  %v150 = vmax.f32 %v133, 0.0
  %v151 = vsub.f32 %v149, %v14
  %v152 = vsub.f32 %v150, %v15
  %v153 = vmul.f32 %v146, %v151
  %v154 = vmul.f32 %v148, %v152
  %v155 = vadd.f32 %v153, %v14
  %v156 = vadd.f32 %v154, %v15
  %157 = vst [vmem:[%s3] sm:$0xff] %v155
  %158 = vst [vmem:[%s3 + $0x8] sm:$0xff] %v156
  // Predicated region
  $region14: #{highway_forward.1} parent=0 // pred_check
    _
  $region15: #{highway_forward.1} parent=0 // pred_check_branch
    %160 = sbr.rel (0) target = $region17
  $region16: #{highway_forward.1} parent=0 // pred_region
    _
  $region17: #{highway_forward.1} parent=0 // pred_fallthru
    _
  // Predicated region
  $region18: #{highway_forward.1} parent=0 // pred_check
    _
  $region19: #{highway_forward.1} parent=0 // pred_check_branch
    %162 = sbr.rel (0) target = $region21
  $region20: #{highway_forward.1} parent=0 // pred_region
    _
  $region21: #{highway_forward.1} parent=0 // pred_fallthru
    _

</llo_original>
